<compile_context>
chip_gen: v5e
topology: v5e:2x2
jax: 0.10.0
libtpu: 0.0.40
codegen_flags: <defaults>
</compile_context>

<pallas_src>
import functools

import jax
import jax.numpy as jnp
from jax.experimental import pallas as pl
from jax.experimental.pallas import tpu as pltpu


EPS = 1e-5
NEG_SLOPE = 0.2
LANE = 128
SUBLANE = 8


def _generator_kernel(x_ref,
                      w1_ref, b1_ref, g1_ref, beta1_ref,
                      w2_ref, b2_ref, g2_ref, beta2_ref,
                      w3_ref, b3_ref, g3_ref, beta3_ref,
                      w4_ref, b4_ref,
                      o_ref):
    """Fused Linear->LeakyReLU->BatchNorm (x3) -> Linear -> Tanh."""
    inv_b = 1.0 / x_ref.shape[0]          # static trace-time constant

    def lin_lrelu_bn(h_bf16, w_ref, b_ref, g_ref, beta_ref):
        # Linear: bf16 operands on the MXU, f32 accumulate.
        y = jnp.dot(h_bf16, w_ref[...],
                    preferred_element_type=jnp.float32) + b_ref[...]
        # LeakyReLU(0.2): single vmax.
        y = jnp.maximum(y, NEG_SLOPE * y)
        # BatchNorm1d (training mode) via single-pass sum / sum-of-squares.
        s = jnp.sum(y, axis=0, keepdims=True)
        ss = jnp.sum(y * y, axis=0, keepdims=True)
        mean = s * inv_b
        var = jnp.maximum(ss * inv_b - mean * mean, 0.0)   # guard cancellation
        # Fold gamma and the mean into row-sized scale/shift ([1, F]).
        scale = g_ref[...] * jax.lax.rsqrt(var + EPS)
        shift = beta_ref[...] - mean * scale
        # Emit bf16 directly: the only consumer is the next bf16 matmul.
        return (y * scale + shift).astype(jnp.bfloat16)

    h = x_ref[...]                        # already bf16 from the wrapper
    h = lin_lrelu_bn(h, w1_ref, b1_ref, g1_ref, beta1_ref)
    h = lin_lrelu_bn(h, w2_ref, b2_ref, g2_ref, beta2_ref)
    h = lin_lrelu_bn(h, w3_ref, b3_ref, g3_ref, beta3_ref)
    # Final Linear + Tanh (tanh goes to the EUP, free slot).
    y = jnp.dot(h, w4_ref[...],
                preferred_element_type=jnp.float32) + b4_ref[...]
    o_ref[...] = jnp.tanh(y).astype(o_ref.dtype)


def _round_up(n, m):
    return (n + m - 1) // m * m


def _pad_cols(a, cols, value=0.0):
    return jnp.pad(a, ((0, 0), (0, cols - a.shape[1])), constant_values=value)


def _pad2(a, rows, cols, value=0.0):
    return jnp.pad(a, ((0, rows - a.shape[0]), (0, cols - a.shape[1])),
                   constant_values=value)


def _vmem_capacity_bytes():
    """Physical VMEM per core; conservative 64 MiB fallback if query fails."""
    try:
        cap = int(pltpu.get_tpu_info().vmem_capacity_bytes)
        if cap > 0:
            return cap
    except Exception:
        pass
    return 64 * 1024 * 1024


def prepare_params(params):
    """One-time parameter preparation: zero-pad every feature (lane) dim to a
    multiple of 128 and cast weights to bf16 for the MXU fast path.  The
    returned dict should be built once and reused across forward calls so the
    padding/cast XLA ops and duplicated HBM copies are not paid per step."""
    noise_dim, hidden_dim = params["w1"].shape
    data_dim = params["w4"].shape[1]
    nd_p = _round_up(noise_dim, LANE)
    hd_p = _round_up(hidden_dim, LANE)
    dd_p = _round_up(data_dim, LANE)

    prep = {
        "w1": _pad2(params["w1"], nd_p, hd_p).astype(jnp.bfloat16),
        "w2": _pad2(params["w2"], hd_p, hd_p).astype(jnp.bfloat16),
        "w3": _pad2(params["w3"], hd_p, hd_p).astype(jnp.bfloat16),
        "w4": _pad2(params["w4"], hd_p, dd_p).astype(jnp.bfloat16),
        "b1": _pad_cols(params["b1"], hd_p),
        "b2": _pad_cols(params["b2"], hd_p),
        "b3": _pad_cols(params["b3"], hd_p),
        "b4": _pad_cols(params["b4"], dd_p),
        "g1": _pad_cols(params["g1"], hd_p, value=1.0),
        "g2": _pad_cols(params["g2"], hd_p, value=1.0),
        "g3": _pad_cols(params["g3"], hd_p, value=1.0),
        "beta1": _pad_cols(params["beta1"], hd_p),
        "beta2": _pad_cols(params["beta2"], hd_p),
        "beta3": _pad_cols(params["beta3"], hd_p),
    }
    prep = jax.tree_util.tree_map(jnp.asarray, prep)
    return prep, data_dim


@functools.partial(jax.jit, static_argnames=("data_dim",))
def generator_forward(noise, prepared, data_dim):
    """noise: [B, noise_dim] float32; prepared/data_dim from prepare_params."""
    B, noise_dim = noise.shape
    nd_p = prepared["w1"].shape[0]
    hd_p = prepared["w1"].shape[1]
    dd_p = prepared["w4"].shape[1]

    # Per-call prep: pad + cast the noise (feeds a bf16 matmul anyway).
    noise_p = _pad_cols(noise.astype(jnp.bfloat16), nd_p)

    args = (noise_p,
            prepared["w1"], prepared["b1"], prepared["g1"], prepared["beta1"],
            prepared["w2"], prepared["b2"], prepared["g2"], prepared["beta2"],
            prepared["w3"], prepared["b3"], prepared["g3"], prepared["beta3"],
            prepared["w4"], prepared["b4"])

    # VMEM budget: resident inputs + output tile + live temporaries
    # (~3 f32 [B, hd_p] slabs + the bf16 activation), doubled for headroom,
    # capped at ~87% of the chip's physical VMEM (leaves compiler scratch).
    resident = sum(a.size * a.dtype.itemsize for a in args)
    resident += B * dd_p * 4                                   # f32 output
    working = 3 * B * hd_p * 4 + B * hd_p * 2                  # live temps
    need = resident + working
    vmem_budget = int(0.87 * _vmem_capacity_bytes())
    if need > vmem_budget:
        # TODO(synk): batch-tiled two-sweep BN path for batches that exceed
        # the fused-kernel VMEM budget (and v7x dual-TC batch sharding).
        raise ValueError(
            f"Generator batch too large for fused exact-BN kernel: needs "
            f"~{need} bytes VMEM, budget {vmem_budget}. Reduce batch size.")
    vmem_limit = int(min(vmem_budget, max(2 * need, 4 * 1024 * 1024)))

    vmem_spec = pl.BlockSpec(memory_space=pltpu.MemorySpace.VMEM)
    out_p = pl.pallas_call(
        _generator_kernel,
        out_shape=jax.ShapeDtypeStruct((B, dd_p), jnp.float32),
        in_specs=[vmem_spec] * len(args),
        out_specs=vmem_spec,
        compiler_params=pltpu.CompilerParams(vmem_limit_bytes=vmem_limit),
    )(*args)
    return out_p[:, :data_dim]


def init_params(key, noise_dim, data_dim, hidden_dim):
    """Deterministic PyTorch-style init: U(-1/sqrt(fan_in), 1/sqrt(fan_in)) for
    Linear weight & bias; BatchNorm gamma=1, beta=0. All stored as 2-D f32
    arrays (weights [in, out]) so rows/cols broadcast cleanly in the kernel."""
    dims = [(noise_dim, hidden_dim), (hidden_dim, hidden_dim),
            (hidden_dim, hidden_dim), (hidden_dim, data_dim)]
    params = {}
    keys = jax.random.split(key, 2 * len(dims))
    for i, (fan_in, fan_out) in enumerate(dims, start=1):
        bound = 1.0 / jnp.sqrt(jnp.float32(fan_in))
        params[f"w{i}"] = jax.random.uniform(
            keys[2 * (i - 1)], (fan_in, fan_out), jnp.float32, -bound, bound)
        params[f"b{i}"] = jax.random.uniform(
            keys[2 * (i - 1) + 1], (1, fan_out), jnp.float32, -bound, bound)
        if i <= 3:  # BatchNorm params follow the first three Linear layers
            params[f"g{i}"] = jnp.ones((1, fan_out), jnp.float32)
            params[f"beta{i}"] = jnp.zeros((1, fan_out), jnp.float32)
    return params


if __name__ == "__main__":
    # B is a multiple of 8 (sublane tile) per the caller contract.
    B, NOISE_DIM, DATA_DIM, HIDDEN_DIM = 8, 16, 8, 32

    key = jax.random.PRNGKey(0)
    k_noise, k_params = jax.random.split(key)
    noise = jax.random.normal(k_noise, (B, NOISE_DIM), dtype=jnp.float32)
    params = init_params(k_params, NOISE_DIM, DATA_DIM, HIDDEN_DIM)

    # One-time parameter prep (padding + bf16 cast), reused across calls.
    prepared, data_dim = prepare_params(params)
    prepared = jax.block_until_ready(prepared)

    out = generator_forward(noise, prepared, data_dim)
    jax.block_until_ready(out)
    assert out.shape == (B, DATA_DIM)
    assert bool(jnp.all(jnp.isfinite(out)))
    assert bool(jnp.all(jnp.abs(out) <= 1.0))  # tanh range
    print("KERNEL_OK")
</pallas_src>

<mosaic_0001>
module attributes {stable_mosaic.version = 11 : i64} {
  func.func @_generator_kernel(%arg0: memref<8x128xbf16, #tpu.memory_space<vmem>>, %arg1: memref<128x128xbf16, #tpu.memory_space<vmem>>, %arg2: memref<1x128xf32, #tpu.memory_space<vmem>>, %arg3: memref<1x128xf32, #tpu.memory_space<vmem>>, %arg4: memref<1x128xf32, #tpu.memory_space<vmem>>, %arg5: memref<128x128xbf16, #tpu.memory_space<vmem>>, %arg6: memref<1x128xf32, #tpu.memory_space<vmem>>, %arg7: memref<1x128xf32, #tpu.memory_space<vmem>>, %arg8: memref<1x128xf32, #tpu.memory_space<vmem>>, %arg9: memref<128x128xbf16, #tpu.memory_space<vmem>>, %arg10: memref<1x128xf32, #tpu.memory_space<vmem>>, %arg11: memref<1x128xf32, #tpu.memory_space<vmem>>, %arg12: memref<1x128xf32, #tpu.memory_space<vmem>>, %arg13: memref<128x128xbf16, #tpu.memory_space<vmem>>, %arg14: memref<1x128xf32, #tpu.memory_space<vmem>>, %arg15: memref<8x128xf32, #tpu.memory_space<vmem>>) attributes {dimension_semantics = [], scalar_prefetch = 0 : i64, scratch_operands = 0 : i64, tpu.core_type = #tpu.core_type<tc>} {
    %c0 = arith.constant 0 : index
    %c0_0 = arith.constant 0 : index
    %0 = vector.load %arg0[%c0, %c0_0] : memref<8x128xbf16, #tpu.memory_space<vmem>>, vector<8x128xbf16>
    %c0_1 = arith.constant 0 : index
    %c0_2 = arith.constant 0 : index
    %1 = vector.load %arg1[%c0_1, %c0_2] : memref<128x128xbf16, #tpu.memory_space<vmem>>, vector<128x128xbf16>
    %cst = arith.constant dense<0.000000e+00> : vector<8x128xf32>
    %2 = tpu.matmul %0, %1, %cst {dimension_numbers = #tpu.dot_dimension_numbers<[1], [0], [0], [1], [0, 0, 1, 1], [], []>} : vector<8x128xbf16>, vector<128x128xbf16>, vector<8x128xf32> -> vector<8x128xf32>
    %c0_3 = arith.constant 0 : index
    %c0_4 = arith.constant 0 : index
    %3 = vector.load %arg2[%c0_3, %c0_4] : memref<1x128xf32, #tpu.memory_space<vmem>>, vector<1x128xf32>
    %4 = vector.broadcast %3 : vector<1x128xf32> to vector<8x128xf32>
    %5 = arith.addf %2, %4 : vector<8x128xf32>
    %cst_5 = arith.constant 2.000000e-01 : f32
    %6 = vector.broadcast %cst_5 : f32 to vector<8x128xf32>
    %7 = arith.mulf %6, %5 : vector<8x128xf32>
    %8 = arith.maximumf %5, %7 : vector<8x128xf32>
    %cst_6 = arith.constant dense<0.000000e+00> : vector<128xf32>
    %9 = vector.multi_reduction <add>, %8, %cst_6 [0] : vector<8x128xf32> to vector<128xf32>
    %10 = vector.shape_cast %9 : vector<128xf32> to vector<1x128xf32>
    %11 = arith.mulf %8, %8 : vector<8x128xf32>
    %cst_7 = arith.constant dense<0.000000e+00> : vector<128xf32>
    %12 = vector.multi_reduction <add>, %11, %cst_7 [0] : vector<8x128xf32> to vector<128xf32>
    %13 = vector.shape_cast %12 : vector<128xf32> to vector<1x128xf32>
    %cst_8 = arith.constant 1.250000e-01 : f32
    %14 = vector.broadcast %cst_8 : f32 to vector<1x128xf32>
    %15 = arith.mulf %10, %14 : vector<1x128xf32>
    %cst_9 = arith.constant 1.250000e-01 : f32
    %16 = vector.broadcast %cst_9 : f32 to vector<1x128xf32>
    %17 = arith.mulf %13, %16 : vector<1x128xf32>
    %18 = arith.mulf %15, %15 : vector<1x128xf32>
    %19 = arith.subf %17, %18 : vector<1x128xf32>
    %cst_10 = arith.constant 0.000000e+00 : f32
    %20 = vector.broadcast %cst_10 : f32 to vector<1x128xf32>
    %21 = arith.maximumf %19, %20 : vector<1x128xf32>
    %c0_11 = arith.constant 0 : index
    %c0_12 = arith.constant 0 : index
    %22 = vector.load %arg3[%c0_11, %c0_12] : memref<1x128xf32, #tpu.memory_space<vmem>>, vector<1x128xf32>
    %cst_13 = arith.constant 9.99999974E-6 : f32
    %23 = vector.broadcast %cst_13 : f32 to vector<1x128xf32>
    %24 = arith.addf %21, %23 : vector<1x128xf32>
    %25 = math.rsqrt %24 : vector<1x128xf32>
    %26 = arith.mulf %22, %25 : vector<1x128xf32>
    %c0_14 = arith.constant 0 : index
    %c0_15 = arith.constant 0 : index
    %27 = vector.load %arg4[%c0_14, %c0_15] : memref<1x128xf32, #tpu.memory_space<vmem>>, vector<1x128xf32>
    %28 = arith.mulf %15, %26 : vector<1x128xf32>
    %29 = arith.subf %27, %28 : vector<1x128xf32>
    %30 = vector.broadcast %26 : vector<1x128xf32> to vector<8x128xf32>
    %31 = arith.mulf %8, %30 : vector<8x128xf32>
    %32 = vector.broadcast %29 : vector<1x128xf32> to vector<8x128xf32>
    %33 = arith.addf %31, %32 : vector<8x128xf32>
    %34 = arith.truncf %33 : vector<8x128xf32> to vector<8x128xbf16>
    %c0_16 = arith.constant 0 : index
    %c0_17 = arith.constant 0 : index
    %35 = vector.load %arg5[%c0_16, %c0_17] : memref<128x128xbf16, #tpu.memory_space<vmem>>, vector<128x128xbf16>
    %cst_18 = arith.constant dense<0.000000e+00> : vector<8x128xf32>
    %36 = tpu.matmul %34, %35, %cst_18 {dimension_numbers = #tpu.dot_dimension_numbers<[1], [0], [0], [1], [0, 0, 1, 1], [], []>} : vector<8x128xbf16>, vector<128x128xbf16>, vector<8x128xf32> -> vector<8x128xf32>
    %c0_19 = arith.constant 0 : index
    %c0_20 = arith.constant 0 : index
    %37 = vector.load %arg6[%c0_19, %c0_20] : memref<1x128xf32, #tpu.memory_space<vmem>>, vector<1x128xf32>
    %38 = vector.broadcast %37 : vector<1x128xf32> to vector<8x128xf32>
    %39 = arith.addf %36, %38 : vector<8x128xf32>
    %cst_21 = arith.constant 2.000000e-01 : f32
    %40 = vector.broadcast %cst_21 : f32 to vector<8x128xf32>
    %41 = arith.mulf %40, %39 : vector<8x128xf32>
    %42 = arith.maximumf %39, %41 : vector<8x128xf32>
    %cst_22 = arith.constant dense<0.000000e+00> : vector<128xf32>
    %43 = vector.multi_reduction <add>, %42, %cst_22 [0] : vector<8x128xf32> to vector<128xf32>
    %44 = vector.shape_cast %43 : vector<128xf32> to vector<1x128xf32>
    %45 = arith.mulf %42, %42 : vector<8x128xf32>
    %cst_23 = arith.constant dense<0.000000e+00> : vector<128xf32>
    %46 = vector.multi_reduction <add>, %45, %cst_23 [0] : vector<8x128xf32> to vector<128xf32>
    %47 = vector.shape_cast %46 : vector<128xf32> to vector<1x128xf32>
    %cst_24 = arith.constant 1.250000e-01 : f32
    %48 = vector.broadcast %cst_24 : f32 to vector<1x128xf32>
    %49 = arith.mulf %44, %48 : vector<1x128xf32>
    %cst_25 = arith.constant 1.250000e-01 : f32
    %50 = vector.broadcast %cst_25 : f32 to vector<1x128xf32>
    %51 = arith.mulf %47, %50 : vector<1x128xf32>
    %52 = arith.mulf %49, %49 : vector<1x128xf32>
    %53 = arith.subf %51, %52 : vector<1x128xf32>
    %cst_26 = arith.constant 0.000000e+00 : f32
    %54 = vector.broadcast %cst_26 : f32 to vector<1x128xf32>
    %55 = arith.maximumf %53, %54 : vector<1x128xf32>
    %c0_27 = arith.constant 0 : index
    %c0_28 = arith.constant 0 : index
    %56 = vector.load %arg7[%c0_27, %c0_28] : memref<1x128xf32, #tpu.memory_space<vmem>>, vector<1x128xf32>
    %cst_29 = arith.constant 9.99999974E-6 : f32
    %57 = vector.broadcast %cst_29 : f32 to vector<1x128xf32>
    %58 = arith.addf %55, %57 : vector<1x128xf32>
    %59 = math.rsqrt %58 : vector<1x128xf32>
    %60 = arith.mulf %56, %59 : vector<1x128xf32>
    %c0_30 = arith.constant 0 : index
    %c0_31 = arith.constant 0 : index
    %61 = vector.load %arg8[%c0_30, %c0_31] : memref<1x128xf32, #tpu.memory_space<vmem>>, vector<1x128xf32>
    %62 = arith.mulf %49, %60 : vector<1x128xf32>
    %63 = arith.subf %61, %62 : vector<1x128xf32>
    %64 = vector.broadcast %60 : vector<1x128xf32> to vector<8x128xf32>
    %65 = arith.mulf %42, %64 : vector<8x128xf32>
    %66 = vector.broadcast %63 : vector<1x128xf32> to vector<8x128xf32>
    %67 = arith.addf %65, %66 : vector<8x128xf32>
    %68 = arith.truncf %67 : vector<8x128xf32> to vector<8x128xbf16>
    %c0_32 = arith.constant 0 : index
    %c0_33 = arith.constant 0 : index
    %69 = vector.load %arg9[%c0_32, %c0_33] : memref<128x128xbf16, #tpu.memory_space<vmem>>, vector<128x128xbf16>
    %cst_34 = arith.constant dense<0.000000e+00> : vector<8x128xf32>
    %70 = tpu.matmul %68, %69, %cst_34 {dimension_numbers = #tpu.dot_dimension_numbers<[1], [0], [0], [1], [0, 0, 1, 1], [], []>} : vector<8x128xbf16>, vector<128x128xbf16>, vector<8x128xf32> -> vector<8x128xf32>
    %c0_35 = arith.constant 0 : index
    %c0_36 = arith.constant 0 : index
    %71 = vector.load %arg10[%c0_35, %c0_36] : memref<1x128xf32, #tpu.memory_space<vmem>>, vector<1x128xf32>
    %72 = vector.broadcast %71 : vector<1x128xf32> to vector<8x128xf32>
    %73 = arith.addf %70, %72 : vector<8x128xf32>
    %cst_37 = arith.constant 2.000000e-01 : f32
    %74 = vector.broadcast %cst_37 : f32 to vector<8x128xf32>
    %75 = arith.mulf %74, %73 : vector<8x128xf32>
    %76 = arith.maximumf %73, %75 : vector<8x128xf32>
    %cst_38 = arith.constant dense<0.000000e+00> : vector<128xf32>
    %77 = vector.multi_reduction <add>, %76, %cst_38 [0] : vector<8x128xf32> to vector<128xf32>
    %78 = vector.shape_cast %77 : vector<128xf32> to vector<1x128xf32>
    %79 = arith.mulf %76, %76 : vector<8x128xf32>
    %cst_39 = arith.constant dense<0.000000e+00> : vector<128xf32>
    %80 = vector.multi_reduction <add>, %79, %cst_39 [0] : vector<8x128xf32> to vector<128xf32>
    %81 = vector.shape_cast %80 : vector<128xf32> to vector<1x128xf32>
    %cst_40 = arith.constant 1.250000e-01 : f32
    %82 = vector.broadcast %cst_40 : f32 to vector<1x128xf32>
    %83 = arith.mulf %78, %82 : vector<1x128xf32>
    %cst_41 = arith.constant 1.250000e-01 : f32
    %84 = vector.broadcast %cst_41 : f32 to vector<1x128xf32>
    %85 = arith.mulf %81, %84 : vector<1x128xf32>
    %86 = arith.mulf %83, %83 : vector<1x128xf32>
    %87 = arith.subf %85, %86 : vector<1x128xf32>
    %cst_42 = arith.constant 0.000000e+00 : f32
    %88 = vector.broadcast %cst_42 : f32 to vector<1x128xf32>
    %89 = arith.maximumf %87, %88 : vector<1x128xf32>
    %c0_43 = arith.constant 0 : index
    %c0_44 = arith.constant 0 : index
    %90 = vector.load %arg11[%c0_43, %c0_44] : memref<1x128xf32, #tpu.memory_space<vmem>>, vector<1x128xf32>
    %cst_45 = arith.constant 9.99999974E-6 : f32
    %91 = vector.broadcast %cst_45 : f32 to vector<1x128xf32>
    %92 = arith.addf %89, %91 : vector<1x128xf32>
    %93 = math.rsqrt %92 : vector<1x128xf32>
    %94 = arith.mulf %90, %93 : vector<1x128xf32>
    %c0_46 = arith.constant 0 : index
    %c0_47 = arith.constant 0 : index
    %95 = vector.load %arg12[%c0_46, %c0_47] : memref<1x128xf32, #tpu.memory_space<vmem>>, vector<1x128xf32>
    %96 = arith.mulf %83, %94 : vector<1x128xf32>
    %97 = arith.subf %95, %96 : vector<1x128xf32>
    %98 = vector.broadcast %94 : vector<1x128xf32> to vector<8x128xf32>
    %99 = arith.mulf %76, %98 : vector<8x128xf32>
    %100 = vector.broadcast %97 : vector<1x128xf32> to vector<8x128xf32>
    %101 = arith.addf %99, %100 : vector<8x128xf32>
    %102 = arith.truncf %101 : vector<8x128xf32> to vector<8x128xbf16>
    %c0_48 = arith.constant 0 : index
    %c0_49 = arith.constant 0 : index
    %103 = vector.load %arg13[%c0_48, %c0_49] : memref<128x128xbf16, #tpu.memory_space<vmem>>, vector<128x128xbf16>
    %cst_50 = arith.constant dense<0.000000e+00> : vector<8x128xf32>
    %104 = tpu.matmul %102, %103, %cst_50 {dimension_numbers = #tpu.dot_dimension_numbers<[1], [0], [0], [1], [0, 0, 1, 1], [], []>} : vector<8x128xbf16>, vector<128x128xbf16>, vector<8x128xf32> -> vector<8x128xf32>
    %c0_51 = arith.constant 0 : index
    %c0_52 = arith.constant 0 : index
    %105 = vector.load %arg14[%c0_51, %c0_52] : memref<1x128xf32, #tpu.memory_space<vmem>>, vector<1x128xf32>
    %106 = vector.broadcast %105 : vector<1x128xf32> to vector<8x128xf32>
    %107 = arith.addf %104, %106 : vector<8x128xf32>
    %108 = math.tanh %107 : vector<8x128xf32>
    %c0_53 = arith.constant 0 : index
    %c0_54 = arith.constant 0 : index
    %109 = vector.load %arg15[%c0_53, %c0_54] : memref<8x128xf32, #tpu.memory_space<vmem>>, vector<8x128xf32>
    tpu.vector_store %arg15[%c0_53, %c0_54], %108 {strides = array<i32>} : memref<8x128xf32, #tpu.memory_space<vmem>>, vector<8x128xf32>,
    return
  }
}

</mosaic_0001>

<llo_original>
// kernel: generator_forward.1
$region0: #{generator_forward.1}
  #allocation0 [shape = 'u32[]', space=smem, size = 0x4, offset = 0x4, fixed_abs, tag = 'smem constant byte address 0x4 - core index']
  #allocation1 [shape = 'u32[72,128]{1,0:T(1,128)}', space=vmem, size = 0x9000, scoped, tag = 'internal scratch']
  %s0 = inlined_call_operand.vmem [shape: bf16[8,128], index: 0, kind: input, shape index: {}]
  %s1 = inlined_call_operand.hbm [shape: bf16[128,128], index: 1, kind: input, shape index: {}]
  %s2 = inlined_call_operand.vmem [shape: f32[1,128], index: 2, kind: input, shape index: {}]
  %s3 = inlined_call_operand.vmem [shape: f32[1,128], index: 3, kind: input, shape index: {}]
  %s4 = inlined_call_operand.vmem [shape: f32[1,128], index: 4, kind: input, shape index: {}]
  %s5 = inlined_call_operand.hbm [shape: bf16[128,128], index: 5, kind: input, shape index: {}]
  %s6 = inlined_call_operand.vmem [shape: f32[1,128], index: 6, kind: input, shape index: {}]
  %s7 = inlined_call_operand.vmem [shape: f32[1,128], index: 7, kind: input, shape index: {}]
  %s8 = inlined_call_operand.vmem [shape: f32[1,128], index: 8, kind: input, shape index: {}]
  %s9 = inlined_call_operand.hbm [shape: bf16[128,128], index: 9, kind: input, shape index: {}]
  %s10 = inlined_call_operand.vmem [shape: f32[1,128], index: 10, kind: input, shape index: {}]
  %s11 = inlined_call_operand.vmem [shape: f32[1,128], index: 11, kind: input, shape index: {}]
  %s12 = inlined_call_operand.vmem [shape: f32[1,128], index: 12, kind: input, shape index: {}]
  %s13 = inlined_call_operand.hbm [shape: bf16[128,128], index: 13, kind: input, shape index: {}]
  %s14 = inlined_call_operand.vmem [shape: f32[1,128], index: 14, kind: input, shape index: {}]
  %s15 = inlined_call_operand.hbm [shape: f32[8,128], index: 15, kind: output, shape index: {}]
  %s16 = sld [smem:[#allocation0]]
  $region86: #{generator_forward.1} parent=0
    _
  %s18 = ssub.s32 1, %s16
  %s19 = scalar_select 0, %s18, %s16
  $region1: #{generator_forward.1} parent=0
    #allocation2 [shape = 'u8[32768]{0}', space=vmem, size = 0x8000, scoped, tag = 'input window, operand 1, single buffered']
    #allocation3 [shape = 's32[1]{0}', space=sflag, size = 0x4, scoped, tag = 'scoped memory for generator_forward.1']
    #allocation4 [shape = 's32[1]{0}', space=sflag, size = 0x4, scoped, tag = 'scoped memory for generator_forward.1']
    #allocation5 [shape = 'u8[32768]{0}', space=vmem, size = 0x8000, scoped, tag = 'input window, operand 5, single buffered']
    #allocation6 [shape = 's32[1]{0}', space=sflag, size = 0x4, scoped, tag = 'scoped memory for generator_forward.1']
    #allocation7 [shape = 'u8[32768]{0}', space=vmem, size = 0x8000, scoped, tag = 'input window, operand 9, single buffered']
    #allocation8 [shape = 'u8[32768]{0}', space=vmem, size = 0x8000, scoped, tag = 'input window, operand 13, single buffered']
    #allocation9 [shape = 's32[1]{0}', space=sflag, size = 0x4, scoped, tag = 'scoped memory for generator_forward.1']
    #allocation10 [shape = 'u8[4096]{0}', space=vmem, size = 0x1000, scoped, tag = 'output window, operand 0, single buffered']
    %20 = vsyncpa [#allocation3], 0
    %21 = vsyncpa [#allocation6], 0
    %22 = vsyncpa [#allocation9], 0
    %23 = vsyncpa [#allocation4], 0
    // Predicated region
    $region2: #{generator_forward.1} parent=1 // pred_check
      _
    $region3: #{generator_forward.1} parent=1 // pred_check_branch
      %25 = sbr.rel (0) target = $region5
    $region4: #{generator_forward.1} parent=1 // pred_region
      _
    $region5: #{generator_forward.1} parent=1 // pred_fallthru
      _
    // Predicated region
    $region6: #{generator_forward.1} parent=1 // pred_check
      _
    $region7: #{generator_forward.1} parent=1 // pred_check_branch
      %27 = sbr.rel (0) target = $region9
    $region8: #{generator_forward.1} parent=1 // pred_region
      %29 = vsyncadd [#allocation3], 0
      %s30 = sshll.u32 %s1, 4
      %s31 = int_to_ptr.hbm [resolvable:$true] %s30
      %s32 = sshll.u32 [#allocation2], 4
      %s33 = int_to_ptr.vmem [resolvable:$true] %s32
      %38 = dma.hbm_to_vmem [thread:$0]  %s31, 1024, %s33, [#allocation3], 64, 64, 4
    $region9: #{generator_forward.1} parent=1 // pred_fallthru
      _
    // Predicated region
    $region10: #{generator_forward.1} parent=1 // pred_check
      _
    $region11: #{generator_forward.1} parent=1 // pred_check_branch
      %40 = sbr.rel (0) target = $region13
    $region12: #{generator_forward.1} parent=1 // pred_region
      _
    $region13: #{generator_forward.1} parent=1 // pred_fallthru
      _
    // Predicated region
    $region14: #{generator_forward.1} parent=1 // pred_check
      _
    $region15: #{generator_forward.1} parent=1 // pred_check_branch
      %42 = sbr.rel (0) target = $region17
    $region16: #{generator_forward.1} parent=1 // pred_region
      _
    $region17: #{generator_forward.1} parent=1 // pred_fallthru
      _
    // Predicated region
    $region18: #{generator_forward.1} parent=1 // pred_check
      _
    $region19: #{generator_forward.1} parent=1 // pred_check_branch
      %44 = sbr.rel (0) target = $region21
    $region20: #{generator_forward.1} parent=1 // pred_region
      _
    $region21: #{generator_forward.1} parent=1 // pred_fallthru
      _
    // Predicated region
    $region22: #{generator_forward.1} parent=1 // pred_check
      _
    $region23: #{generator_forward.1} parent=1 // pred_check_branch
      %46 = sbr.rel (0) target = $region25
    $region24: #{generator_forward.1} parent=1 // pred_region
      %48 = vsyncadd [#allocation6], 0
      %s49 = sshll.u32 %s5, 4
      %s50 = int_to_ptr.hbm [resolvable:$true] %s49
      %s51 = sshll.u32 [#allocation5], 4
      %s52 = int_to_ptr.vmem [resolvable:$true] %s51
      %57 = dma.hbm_to_vmem [thread:$0]  %s50, 1024, %s52, [#allocation6], 64, 64, 4
    $region25: #{generator_forward.1} parent=1 // pred_fallthru
      _
    // Predicated region
    $region26: #{generator_forward.1} parent=1 // pred_check
      _
    $region27: #{generator_forward.1} parent=1 // pred_check_branch
      %59 = sbr.rel (0) target = $region29
    $region28: #{generator_forward.1} parent=1 // pred_region
      _
    $region29: #{generator_forward.1} parent=1 // pred_fallthru
      _
    // Predicated region
    $region30: #{generator_forward.1} parent=1 // pred_check
      _
    $region31: #{generator_forward.1} parent=1 // pred_check_branch
      %61 = sbr.rel (0) target = $region33
    $region32: #{generator_forward.1} parent=1 // pred_region
      _
    $region33: #{generator_forward.1} parent=1 // pred_fallthru
      _
    // Predicated region
    $region34: #{generator_forward.1} parent=1 // pred_check
      _
    $region35: #{generator_forward.1} parent=1 // pred_check_branch
      %63 = sbr.rel (0) target = $region37
    $region36: #{generator_forward.1} parent=1 // pred_region
      _
    $region37: #{generator_forward.1} parent=1 // pred_fallthru
      _
    // Predicated region
    $region38: #{generator_forward.1} parent=1 // pred_check
      _
    $region39: #{generator_forward.1} parent=1 // pred_check_branch
      %65 = sbr.rel (0) target = $region41
    $region40: #{generator_forward.1} parent=1 // pred_region
      %67 = vsyncadd [#allocation6], 0
      %s68 = sshll.u32 %s9, 4
      %s69 = int_to_ptr.hbm [resolvable:$true] %s68
      %s70 = sshll.u32 [#allocation7], 4
      %s71 = int_to_ptr.vmem [resolvable:$true] %s70
      %76 = dma.hbm_to_vmem [thread:$0]  %s69, 1024, %s71, [#allocation6], 64, 64, 4
    $region41: #{generator_forward.1} parent=1 // pred_fallthru
      _
    // Predicated region
    $region42: #{generator_forward.1} parent=1 // pred_check
      _
    $region43: #{generator_forward.1} parent=1 // pred_check_branch
      %78 = sbr.rel (0) target = $region45
    $region44: #{generator_forward.1} parent=1 // pred_region
      _
    $region45: #{generator_forward.1} parent=1 // pred_fallthru
      _
    // Predicated region
    $region46: #{generator_forward.1} parent=1 // pred_check
      _
    $region47: #{generator_forward.1} parent=1 // pred_check_branch
      %80 = sbr.rel (0) target = $region49
    $region48: #{generator_forward.1} parent=1 // pred_region
      _
    $region49: #{generator_forward.1} parent=1 // pred_fallthru
      _
    // Predicated region
    $region50: #{generator_forward.1} parent=1 // pred_check
      _
    $region51: #{generator_forward.1} parent=1 // pred_check_branch
      %82 = sbr.rel (0) target = $region53
    $region52: #{generator_forward.1} parent=1 // pred_region
      _
    $region53: #{generator_forward.1} parent=1 // pred_fallthru
      _
    // Predicated region
    $region54: #{generator_forward.1} parent=1 // pred_check
      _
    $region55: #{generator_forward.1} parent=1 // pred_check_branch
      %84 = sbr.rel (0) target = $region57
    $region56: #{generator_forward.1} parent=1 // pred_region
      %86 = vsyncadd [#allocation9], 0
      %s87 = sshll.u32 %s13, 4
      %s88 = int_to_ptr.hbm [resolvable:$true] %s87
      %s89 = sshll.u32 [#allocation8], 4
      %s90 = int_to_ptr.vmem [resolvable:$true] %s89
      %95 = dma.hbm_to_vmem [thread:$0]  %s88, 1024, %s90, [#allocation9], 64, 64, 4
    $region57: #{generator_forward.1} parent=1 // pred_fallthru
      _
    // Predicated region
    $region58: #{generator_forward.1} parent=1 // pred_check
      _
    $region59: #{generator_forward.1} parent=1 // pred_check_branch
      %97 = sbr.rel (0) target = $region61
    $region60: #{generator_forward.1} parent=1 // pred_region
      _
    $region61: #{generator_forward.1} parent=1 // pred_fallthru
      _
    // Predicated region
    $region62: #{generator_forward.1} parent=1 // pred_check
      _
    $region63: #{generator_forward.1} parent=1 // pred_check_branch
      %99 = sbr.rel (0) target = $region65
    $region64: #{generator_forward.1} parent=1 // pred_region
      %101 = dma.done [#allocation3], 1024
    $region65: #{generator_forward.1} parent=1 // pred_fallthru
      _
    // Predicated region
    $region66: #{generator_forward.1} parent=1 // pred_check
      _
    $region67: #{generator_forward.1} parent=1 // pred_check_branch
      %103 = sbr.rel (0) target = $region69
    $region68: #{generator_forward.1} parent=1 // pred_region
      %105 = dma.done [#allocation6], 1024
    $region69: #{generator_forward.1} parent=1 // pred_fallthru
      _
    // Predicated region
    $region70: #{generator_forward.1} parent=1 // pred_check
      _
    $region71: #{generator_forward.1} parent=1 // pred_check_branch
      %107 = sbr.rel (0) target = $region73
    $region72: #{generator_forward.1} parent=1 // pred_region
      %109 = dma.done [#allocation6], 1024
    $region73: #{generator_forward.1} parent=1 // pred_fallthru
      _
    // Predicated region
    $region74: #{generator_forward.1} parent=1 // pred_check
      _
    $region75: #{generator_forward.1} parent=1 // pred_check_branch
      %111 = sbr.rel (0) target = $region77
    $region76: #{generator_forward.1} parent=1 // pred_region
      %113 = dma.done [#allocation9], 1024
    $region77: #{generator_forward.1} parent=1 // pred_fallthru
      _
    %v114 = vld [vmem:[%s0] sm:$0xf]
    %v115 = vld [vmem:[#allocation2] sm:$0xf]
    %v116 = vld [vmem:[#allocation2 + $0x4] sm:$0xf]
    %v117 = vld [vmem:[#allocation2 + $0x8] sm:$0xf]
    %v118 = vld [vmem:[#allocation2 + $0xc] sm:$0xf]
    %v119 = vld [vmem:[#allocation2 + $0x10] sm:$0xf]
    %v120 = vld [vmem:[#allocation2 + $0x14] sm:$0xf]
    %v121 = vld [vmem:[#allocation2 + $0x18] sm:$0xf]
    %v122 = vld [vmem:[#allocation2 + $0x1c] sm:$0xf]
    %v123 = vld [vmem:[#allocation2 + $0x20] sm:$0xf]
    %v124 = vld [vmem:[#allocation2 + $0x24] sm:$0xf]
    %v125 = vld [vmem:[#allocation2 + $0x28] sm:$0xf]
    %v126 = vld [vmem:[#allocation2 + $0x2c] sm:$0xf]
    %v127 = vld [vmem:[#allocation2 + $0x30] sm:$0xf]
    %v128 = vld [vmem:[#allocation2 + $0x34] sm:$0xf]
    %v129 = vld [vmem:[#allocation2 + $0x38] sm:$0xf]
    %v130 = vld [vmem:[#allocation2 + $0x3c] sm:$0xf]
    %v131 = vld [vmem:[%s2] sm:$0x1]
    %v133 = vperm.slane %v131, 0
    %v151 = vunpack.c.l.b16 %v115
    %v152 = vunpack.c.l.b16 %v116
    %v153 = vunpack.c.l.b16 %v117
    %v154 = vunpack.c.l.b16 %v118
    %v155 = vunpack.c.l.b16 %v119
    %v156 = vunpack.c.l.b16 %v120
    %v157 = vunpack.c.l.b16 %v121
    %v158 = vunpack.c.l.b16 %v122
    %v159 = vunpack.c.l.b16 %v123
    %v160 = vunpack.c.l.b16 %v124
    %v161 = vunpack.c.l.b16 %v125
    %v162 = vunpack.c.l.b16 %v126
    %v163 = vunpack.c.l.b16 %v127
    %v164 = vunpack.c.l.b16 %v128
    %v165 = vunpack.c.l.b16 %v129
    %v166 = vunpack.c.l.b16 %v130
    %v167 = vpack.c.b16 %v152, %v151
    %v168 = vpack.c.b16 %v154, %v153
    %v169 = vpack.c.b16 %v156, %v155
    %v170 = vpack.c.b16 %v158, %v157
    %v171 = vpack.c.b16 %v160, %v159
    %v172 = vpack.c.b16 %v162, %v161
    %v173 = vpack.c.b16 %v164, %v163
    %v174 = vpack.c.b16 %v166, %v165
    %183 = vmatpush.bf16.msra.mxu0 %v174
    %184 = vmatpush.bf16.msra.mxu0 %v173
    %185 = vmatpush.bf16.msra.mxu0 %v172
    %186 = vmatpush.bf16.msra.mxu0 %v171
    %187 = vmatpush.bf16.msra.mxu0 %v170
    %188 = vmatpush.bf16.msra.mxu0 %v169
    %189 = vmatpush.bf16.msra.mxu0 %v168
    %190 = vmatpush.bf16.msra.mxu0 %v167
    %191 = vmatmul.bf16.gmra.mxu0 %v114
    %v192 = vpop.f32.mrf.mxu0
    %v193 = vadd.f32 %v133, %v192
    %v194 = vpop.f32.mrf.mxu0
    %195 = vdwg.mxu0
    %v196 = vmul.f32 %v193, 0.2
    %v197 = vmax.f32 %v193, %v196
    %v198 = vrot.slane %v197, 4
    %v199 = vadd.f32 %v197, %v198
    %v200 = vrot.slane %v199, 2
    %v201 = vadd.f32 %v199, %v200
    %v202 = vrot.slane %v201, 1
    %v203 = vadd.f32 %v201, %v202
    %v204 = vmul.f32 %v197, %v197
    %v205 = vrot.slane %v204, 4
    %v206 = vadd.f32 %v204, %v205
    %v207 = vrot.slane %v206, 2
    %v208 = vadd.f32 %v206, %v207
    %v209 = vrot.slane %v208, 1
    %v210 = vadd.f32 %v208, %v209
    %v211 = vmul.f32 %v203, 0.125
    %v212 = vmul.f32 %v210, 0.125
    %v213 = vmul.f32 %v211, %v211
    %v214 = vsub.f32 %v212, %v213
    %v215 = vmax.f32 %v214, 0.0
    %v216 = vld [vmem:[%s3] sm:$0x1]
    %v217 = vadd.f32 %v215, 1e-05
    %v218 = vrsqrt.pop %v217
    %v219 = vmul.f32 %v218, %v217
    %v220 = vmul.f32 %v219, %v218
    %v221 = vmul.f32 0.5, %v220
    %v222 = vsub.f32 1.5, %v221
    %v223 = vmul.f32 %v218, %v222
    %vm224 = vweird.f32 %v217
    %vm225 = vweird.f32 %v218
    %vm226 = vmor %vm224, %vm225
    %v227 = vsel %vm226, %v218, %v223
    %v228 = vmul.f32 %v216, %v227
    %v229 = vld [vmem:[%s4] sm:$0x1]
    %v230 = vmul.f32 %v211, %v228
    %v231 = vsub.f32 %v229, %v230
    %v233 = vperm.slane %v228, 0
    %v235 = vmul.f32 %v197, %v233
    %v237 = vperm.slane %v231, 0
    %v239 = vadd.f32 %v235, %v237
    %v240 = vpack.c.bf16 %v239, %v239
    %v241 = vld [vmem:[#allocation5] sm:$0xf]
    %v242 = vld [vmem:[#allocation5 + $0x4] sm:$0xf]
    %v243 = vld [vmem:[#allocation5 + $0x8] sm:$0xf]
    %v244 = vld [vmem:[#allocation5 + $0xc] sm:$0xf]
    %v245 = vld [vmem:[#allocation5 + $0x10] sm:$0xf]
    %v246 = vld [vmem:[#allocation5 + $0x14] sm:$0xf]
    %v247 = vld [vmem:[#allocation5 + $0x18] sm:$0xf]
    %v248 = vld [vmem:[#allocation5 + $0x1c] sm:$0xf]
    %v249 = vld [vmem:[#allocation5 + $0x20] sm:$0xf]
    %v250 = vld [vmem:[#allocation5 + $0x24] sm:$0xf]
    %v251 = vld [vmem:[#allocation5 + $0x28] sm:$0xf]
    %v252 = vld [vmem:[#allocation5 + $0x2c] sm:$0xf]
    %v253 = vld [vmem:[#allocation5 + $0x30] sm:$0xf]
    %v254 = vld [vmem:[#allocation5 + $0x34] sm:$0xf]
    %v255 = vld [vmem:[#allocation5 + $0x38] sm:$0xf]
    %v256 = vld [vmem:[#allocation5 + $0x3c] sm:$0xf]
    %v257 = vld [vmem:[%s6] sm:$0x1]
    %v259 = vperm.slane %v257, 0
    %v277 = vunpack.c.l.b16 %v241
    %v278 = vunpack.c.l.b16 %v242
    %v279 = vunpack.c.l.b16 %v243
    %v280 = vunpack.c.l.b16 %v244
    %v281 = vunpack.c.l.b16 %v245
    %v282 = vunpack.c.l.b16 %v246
    %v283 = vunpack.c.l.b16 %v247
    %v284 = vunpack.c.l.b16 %v248
    %v285 = vunpack.c.l.b16 %v249
    %v286 = vunpack.c.l.b16 %v250
    %v287 = vunpack.c.l.b16 %v251
    %v288 = vunpack.c.l.b16 %v252
    %v289 = vunpack.c.l.b16 %v253
    %v290 = vunpack.c.l.b16 %v254
    %v291 = vunpack.c.l.b16 %v255
    %v292 = vunpack.c.l.b16 %v256
    %v293 = vpack.c.b16 %v278, %v277
    %v294 = vpack.c.b16 %v280, %v279
    %v295 = vpack.c.b16 %v282, %v281
    %v296 = vpack.c.b16 %v284, %v283
    %v297 = vpack.c.b16 %v286, %v285
    %v298 = vpack.c.b16 %v288, %v287
    %v299 = vpack.c.b16 %v290, %v289
    %v300 = vpack.c.b16 %v292, %v291
    %309 = vmatpush.bf16.msra.mxu0 %v300
    %310 = vmatpush.bf16.msra.mxu0 %v299
    %311 = vmatpush.bf16.msra.mxu0 %v298
    %312 = vmatpush.bf16.msra.mxu0 %v297
    %313 = vmatpush.bf16.msra.mxu0 %v296
    %314 = vmatpush.bf16.msra.mxu0 %v295
    %315 = vmatpush.bf16.msra.mxu0 %v294
    %316 = vmatpush.bf16.msra.mxu0 %v293
    %317 = vmatmul.bf16.gmra.mxu0 %v240
    %v318 = vpop.f32.mrf.mxu0
    %v319 = vadd.f32 %v259, %v318
    %v320 = vpop.f32.mrf.mxu0
    %321 = vdwg.mxu0
    %v322 = vmul.f32 %v319, 0.2
    %v323 = vmax.f32 %v319, %v322
    %v324 = vrot.slane %v323, 4
    %v325 = vadd.f32 %v323, %v324
    %v326 = vrot.slane %v325, 2
    %v327 = vadd.f32 %v325, %v326
    %v328 = vrot.slane %v327, 1
    %v329 = vadd.f32 %v327, %v328
    %v330 = vmul.f32 %v323, %v323
    %v331 = vrot.slane %v330, 4
    %v332 = vadd.f32 %v330, %v331
    %v333 = vrot.slane %v332, 2
    %v334 = vadd.f32 %v332, %v333
    %v335 = vrot.slane %v334, 1
    %v336 = vadd.f32 %v334, %v335
    %v337 = vmul.f32 %v329, 0.125
    %v338 = vmul.f32 %v336, 0.125
    %v339 = vmul.f32 %v337, %v337
    %v340 = vsub.f32 %v338, %v339
    %v341 = vmax.f32 %v340, 0.0
    %v342 = vld [vmem:[%s7] sm:$0x1]
    %v343 = vadd.f32 %v341, 1e-05
    %v344 = vrsqrt.pop %v343
    %v345 = vmul.f32 %v344, %v343
    %v346 = vmul.f32 %v345, %v344
    %v347 = vmul.f32 0.5, %v346
    %v348 = vsub.f32 1.5, %v347
    %v349 = vmul.f32 %v344, %v348
    %vm350 = vweird.f32 %v343
    %vm351 = vweird.f32 %v344
    %vm352 = vmor %vm350, %vm351
    %v353 = vsel %vm352, %v344, %v349
    %v354 = vmul.f32 %v342, %v353
    %v355 = vld [vmem:[%s8] sm:$0x1]
    %v356 = vmul.f32 %v337, %v354
    %v357 = vsub.f32 %v355, %v356
    %v359 = vperm.slane %v354, 0
    %v361 = vmul.f32 %v323, %v359
    %v363 = vperm.slane %v357, 0
    %v365 = vadd.f32 %v361, %v363
    %v366 = vpack.c.bf16 %v365, %v365
    %v367 = vld [vmem:[#allocation7] sm:$0xf]
    %v368 = vld [vmem:[#allocation7 + $0x4] sm:$0xf]
    %v369 = vld [vmem:[#allocation7 + $0x8] sm:$0xf]
    %v370 = vld [vmem:[#allocation7 + $0xc] sm:$0xf]
    %v371 = vld [vmem:[#allocation7 + $0x10] sm:$0xf]
    %v372 = vld [vmem:[#allocation7 + $0x14] sm:$0xf]
    %v373 = vld [vmem:[#allocation7 + $0x18] sm:$0xf]
    %v374 = vld [vmem:[#allocation7 + $0x1c] sm:$0xf]
    %v375 = vld [vmem:[#allocation7 + $0x20] sm:$0xf]
    %v376 = vld [vmem:[#allocation7 + $0x24] sm:$0xf]
    %v377 = vld [vmem:[#allocation7 + $0x28] sm:$0xf]
    %v378 = vld [vmem:[#allocation7 + $0x2c] sm:$0xf]
    %v379 = vld [vmem:[#allocation7 + $0x30] sm:$0xf]
    %v380 = vld [vmem:[#allocation7 + $0x34] sm:$0xf]
    %v381 = vld [vmem:[#allocation7 + $0x38] sm:$0xf]
    %v382 = vld [vmem:[#allocation7 + $0x3c] sm:$0xf]
    %v383 = vld [vmem:[%s10] sm:$0x1]
    %v385 = vperm.slane %v383, 0
    %v403 = vunpack.c.l.b16 %v367
    %v404 = vunpack.c.l.b16 %v368
    %v405 = vunpack.c.l.b16 %v369
    %v406 = vunpack.c.l.b16 %v370
    %v407 = vunpack.c.l.b16 %v371
    %v408 = vunpack.c.l.b16 %v372
    %v409 = vunpack.c.l.b16 %v373
    %v410 = vunpack.c.l.b16 %v374
    %v411 = vunpack.c.l.b16 %v375
    %v412 = vunpack.c.l.b16 %v376
    %v413 = vunpack.c.l.b16 %v377
    %v414 = vunpack.c.l.b16 %v378
    %v415 = vunpack.c.l.b16 %v379
    %v416 = vunpack.c.l.b16 %v380
    %v417 = vunpack.c.l.b16 %v381
    %v418 = vunpack.c.l.b16 %v382
    %v419 = vpack.c.b16 %v404, %v403
    %v420 = vpack.c.b16 %v406, %v405
    %v421 = vpack.c.b16 %v408, %v407
    %v422 = vpack.c.b16 %v410, %v409
    %v423 = vpack.c.b16 %v412, %v411
    %v424 = vpack.c.b16 %v414, %v413
    %v425 = vpack.c.b16 %v416, %v415
    %v426 = vpack.c.b16 %v418, %v417
    %435 = vmatpush.bf16.msra.mxu0 %v426
    %436 = vmatpush.bf16.msra.mxu0 %v425
    %437 = vmatpush.bf16.msra.mxu0 %v424
    %438 = vmatpush.bf16.msra.mxu0 %v423
    %439 = vmatpush.bf16.msra.mxu0 %v422
    %440 = vmatpush.bf16.msra.mxu0 %v421
    %441 = vmatpush.bf16.msra.mxu0 %v420
    %442 = vmatpush.bf16.msra.mxu0 %v419
    %443 = vmatmul.bf16.gmra.mxu0 %v366
    %v444 = vpop.f32.mrf.mxu0
    %v445 = vadd.f32 %v385, %v444
    %v446 = vpop.f32.mrf.mxu0
    %447 = vdwg.mxu0
    %v448 = vmul.f32 %v445, 0.2
    %v449 = vmax.f32 %v445, %v448
    %v450 = vrot.slane %v449, 4
    %v451 = vadd.f32 %v449, %v450
    %v452 = vrot.slane %v451, 2
    %v453 = vadd.f32 %v451, %v452
    %v454 = vrot.slane %v453, 1
    %v455 = vadd.f32 %v453, %v454
    %v456 = vmul.f32 %v449, %v449
    %v457 = vrot.slane %v456, 4
    %v458 = vadd.f32 %v456, %v457
    %v459 = vrot.slane %v458, 2
    %v460 = vadd.f32 %v458, %v459
    %v461 = vrot.slane %v460, 1
    %v462 = vadd.f32 %v460, %v461
    %v463 = vmul.f32 %v455, 0.125
    %v464 = vmul.f32 %v462, 0.125
    %v465 = vmul.f32 %v463, %v463
    %v466 = vsub.f32 %v464, %v465
    %v467 = vmax.f32 %v466, 0.0
    %v468 = vld [vmem:[%s11] sm:$0x1]
    %v469 = vadd.f32 %v467, 1e-05
    %v470 = vrsqrt.pop %v469
    %v471 = vmul.f32 %v470, %v469
    %v472 = vmul.f32 %v471, %v470
    %v473 = vmul.f32 0.5, %v472
    %v474 = vsub.f32 1.5, %v473
    %v475 = vmul.f32 %v470, %v474
    %vm476 = vweird.f32 %v469
    %vm477 = vweird.f32 %v470
    %vm478 = vmor %vm476, %vm477
    %v479 = vsel %vm478, %v470, %v475
    %v480 = vmul.f32 %v468, %v479
    %v481 = vld [vmem:[%s12] sm:$0x1]
    %v482 = vmul.f32 %v463, %v480
    %v483 = vsub.f32 %v481, %v482
    %v485 = vperm.slane %v480, 0
    %v487 = vmul.f32 %v449, %v485
    %v489 = vperm.slane %v483, 0
    %v491 = vadd.f32 %v487, %v489
    %v492 = vpack.c.bf16 %v491, %v491
    %v493 = vld [vmem:[#allocation8] sm:$0xf]
    %v494 = vld [vmem:[#allocation8 + $0x4] sm:$0xf]
    %v495 = vld [vmem:[#allocation8 + $0x8] sm:$0xf]
    %v496 = vld [vmem:[#allocation8 + $0xc] sm:$0xf]
    %v497 = vld [vmem:[#allocation8 + $0x10] sm:$0xf]
    %v498 = vld [vmem:[#allocation8 + $0x14] sm:$0xf]
    %v499 = vld [vmem:[#allocation8 + $0x18] sm:$0xf]
    %v500 = vld [vmem:[#allocation8 + $0x1c] sm:$0xf]
    %v501 = vld [vmem:[#allocation8 + $0x20] sm:$0xf]
    %v502 = vld [vmem:[#allocation8 + $0x24] sm:$0xf]
    %v503 = vld [vmem:[#allocation8 + $0x28] sm:$0xf]
    %v504 = vld [vmem:[#allocation8 + $0x2c] sm:$0xf]
    %v505 = vld [vmem:[#allocation8 + $0x30] sm:$0xf]
    %v506 = vld [vmem:[#allocation8 + $0x34] sm:$0xf]
    %v507 = vld [vmem:[#allocation8 + $0x38] sm:$0xf]
    %v508 = vld [vmem:[#allocation8 + $0x3c] sm:$0xf]
    %v509 = vld [vmem:[%s14] sm:$0x1]
    %v511 = vperm.slane %v509, 0
    %v529 = vunpack.c.l.b16 %v493
    %v530 = vunpack.c.l.b16 %v494
    %v531 = vunpack.c.l.b16 %v495
    %v532 = vunpack.c.l.b16 %v496
    %v533 = vunpack.c.l.b16 %v497
    %v534 = vunpack.c.l.b16 %v498
    %v535 = vunpack.c.l.b16 %v499
    %v536 = vunpack.c.l.b16 %v500
    %v537 = vunpack.c.l.b16 %v501
    %v538 = vunpack.c.l.b16 %v502
    %v539 = vunpack.c.l.b16 %v503
    %v540 = vunpack.c.l.b16 %v504
    %v541 = vunpack.c.l.b16 %v505
    %v542 = vunpack.c.l.b16 %v506
    %v543 = vunpack.c.l.b16 %v507
    %v544 = vunpack.c.l.b16 %v508
    %v545 = vpack.c.b16 %v530, %v529
    %v546 = vpack.c.b16 %v532, %v531
    %v547 = vpack.c.b16 %v534, %v533
    %v548 = vpack.c.b16 %v536, %v535
    %v549 = vpack.c.b16 %v538, %v537
    %v550 = vpack.c.b16 %v540, %v539
    %v551 = vpack.c.b16 %v542, %v541
    %v552 = vpack.c.b16 %v544, %v543
    %561 = vmatpush.bf16.msra.mxu0 %v552
    %562 = vmatpush.bf16.msra.mxu0 %v551
    %563 = vmatpush.bf16.msra.mxu0 %v550
    %564 = vmatpush.bf16.msra.mxu0 %v549
    %565 = vmatpush.bf16.msra.mxu0 %v548
    %566 = vmatpush.bf16.msra.mxu0 %v547
    %567 = vmatpush.bf16.msra.mxu0 %v546
    %568 = vmatpush.bf16.msra.mxu0 %v545
    %569 = vmatmul.bf16.gmra.mxu0 %v492
    %v570 = vpop.f32.mrf.mxu0
    %v571 = vadd.f32 %v511, %v570
    %v572 = vpop.f32.mrf.mxu0
    %573 = vdwg.mxu0
    %v574 = vtanh.pop %v571
    %575 = vst [vmem:[#allocation10] sm:$0xff] %v574
    // Predicated region
    $region78: #{generator_forward.1} parent=1 // pred_check
      _
    $region79: #{generator_forward.1} parent=1 // pred_check_branch
      %577 = sbr.rel (0) target = $region81
    $region80: #{generator_forward.1} parent=1 // pred_region
      %579 = vsyncadd [#allocation4], 0
      %s581 = sshll.u32 [#allocation10], 4
      %s582 = int_to_ptr.vmem [resolvable:$true] %s581
      %s583 = sshll.u32 %s15, 4
      %s584 = int_to_ptr.hbm [resolvable:$true] %s583
      %586 = dma.vmem_to_hbm [thread:$0]  %s582, 128, %s584, [#allocation4]
    $region81: #{generator_forward.1} parent=1 // pred_fallthru
      _
    // Predicated region
    $region82: #{generator_forward.1} parent=1 // pred_check
      _
    $region83: #{generator_forward.1} parent=1 // pred_check_branch
      %588 = sbr.rel (0) target = $region85
    $region84: #{generator_forward.1} parent=1 // pred_region
      %590 = dma.done [#allocation4], 128
    $region85: #{generator_forward.1} parent=1 // pred_fallthru
      _
    %591 = vsyncpa [#allocation3], 1
    %592 = vsyncpa [#allocation6], 1
    %593 = vsyncpa [#allocation9], 1
    %594 = vsyncpa [#allocation4], 1

</llo_original>
